<compile_context>
chip_gen: v7x
topology: tpu7x:2x2x1
jax: 0.10.0
libtpu: 0.0.40
codegen_flags: <defaults>
</compile_context>

<pallas_src>
import functools

import jax
import jax.numpy as jnp
from jax.experimental import pallas as pl
from jax.experimental.pallas import tpu as pltpu


def _h_swish_kernel(x_ref, o_ref):
    # Compute in f32 (free under the DMA bound), cast on the final store.
    x = x_ref[...].astype(jnp.float32)
    y = x * (jnp.clip(x + 3.0, 0.0, 6.0) / 6.0)
    o_ref[...] = y.astype(o_ref.dtype)


def _generation_params():
    """Return (block_bytes, vmem_limit_bytes or None, min_grid_steps)."""
    kind = ""
    try:
        kind = jax.devices()[0].device_kind.lower()
    except Exception:
        pass
    if "v7" in kind or "7x" in kind:
        # 3.2 TB/s HBM: amortize the ~0.35us/step overhead with bigger blocks;
        # raise scoped VMEM (default 32 MiB of 64 MiB physical) so
        # 6 MiB x (2 in + 2 out) buffers fit.  Keep >=4 (even) grid steps so
        # both TensorCores get balanced work.
        return 6 << 20, 48 << 20, 4
    if "v6" in kind:
        # 32 MiB default scoped VMEM: 4 MiB x 4 buffers fits with headroom.
        return 4 << 20, None, 1
    if "v5" in kind:
        # 16 MiB default scoped VMEM: 2 MiB blocks already sit near the
        # 0.82 TB/s roofline; no need to raise the limit.
        return 2 << 20, None, 1
    # Unknown chip: conservative block, ask for an even split just in case.
    return 2 << 20, None, 2


def _choose_layout(n: int, itemsize: int, block_bytes: int, min_steps: int):
    """Pick (lane, rows, tile_rows, pad) for an n-element flat array."""
    # Sublane alignment depends on dtype packing:
    # (8,128) for 32-bit, (16,128) for bf16, (32,128) for int8/fp8.
    sublane = {4: 8, 2: 16, 1: 32}.get(itemsize, 8)

    # Widest lane (multiple of 128) giving a pad-free slab.  Prefer one whose
    # row count is also sublane-aligned; otherwise the ragged rows are simply
    # masked by the grid's last block.
    lane = None
    for cand in (4096, 2048, 1024, 512, 256, 128):
        if n % cand == 0 and (n // cand) % sublane == 0:
            lane = cand
            break
    if lane is None:
        for cand in (4096, 2048, 1024, 512, 256, 128):
            if n % cand == 0:
                lane = cand
                break
    pad = 0
    if lane is None:
        # Rare: n not a multiple of 128.  Pad the flat tail to one lane row.
        lane = 128
        pad = (-n) % lane
    rows = (n + pad) // lane

    # Block rows from the generation-aware byte budget (sublane-aligned).
    budget_rows = max(sublane, (block_bytes // (lane * itemsize)) // sublane * sublane)
    if budget_rows >= rows:
        tile_rows = rows          # single block == full array (always legal)
    else:
        tile_rows = budget_rows   # sublane multiple; ragged tail is masked

    # Keep enough (and preferably even) grid steps for the megacore split.
    if min_steps > 1 and rows > min_steps * sublane:
        steps = pl.cdiv(rows, tile_rows)
        if steps < min_steps:
            tile_rows = max(sublane, (pl.cdiv(rows, min_steps) // sublane) * sublane)
            steps = pl.cdiv(rows, tile_rows)
        if steps > 1 and steps % 2 == 1:
            t = max(sublane, (pl.cdiv(rows, steps + 1) // sublane) * sublane)
            if t < tile_rows and pl.cdiv(rows, t) % 2 == 0:
                tile_rows = t

    return lane, rows, tile_rows, pad


@functools.partial(jax.jit, static_argnames=("donate_input",))
def h_swish(x: jax.Array, *, donate_input: bool = False) -> jax.Array:
    """Elementwise hard-swish matching the PyTorch h_swish module."""
    orig_shape = x.shape
    dtype = x.dtype
    itemsize = jnp.dtype(dtype).itemsize
    n = x.size
    if n == 0:
        return x

    block_bytes, vmem_limit, min_steps = _generation_params()
    lane, rows, tile_rows, pad = _choose_layout(n, itemsize, block_bytes, min_steps)

    flat = x.reshape(-1)
    if pad:
        # Rare path (n % 128 != 0): pad the tail to a full 128-lane row.
        flat = jnp.pad(flat, (0, pad))
    x2d = flat.reshape(rows, lane)

    grid = (pl.cdiv(rows, tile_rows),)

    cp_kwargs = dict(dimension_semantics=("parallel",))
    if vmem_limit is not None:
        cp_kwargs["vmem_limit_bytes"] = vmem_limit

    out2d = pl.pallas_call(
        _h_swish_kernel,
        out_shape=jax.ShapeDtypeStruct((rows, lane), dtype),
        grid_spec=pltpu.PrefetchScalarGridSpec(
            num_scalar_prefetch=0,
            grid=grid,
            in_specs=[pl.BlockSpec((tile_rows, lane), lambda i: (i, 0))],
            out_specs=pl.BlockSpec((tile_rows, lane), lambda i: (i, 0)),
        ),
        compiler_params=pltpu.CompilerParams(**cp_kwargs),
        cost_estimate=pl.CostEstimate(
            flops=5 * rows * lane,
            transcendentals=0,
            bytes_accessed=2 * rows * lane * itemsize,
        ),
        input_output_aliases=({0: 0} if donate_input else {}),
    )(x2d)

    out_flat = out2d.reshape(-1)
    if pad:
        out_flat = out_flat[:n]
    return out_flat.reshape(orig_shape)


if __name__ == "__main__":
    key = jax.random.PRNGKey(0)
    x = jax.random.normal(key, (2, 4, 16, 16), dtype=jnp.float32) * 4.0

    y = h_swish(x)
    jax.block_until_ready(y)

    # Reference check (pure JAX) for correctness.
    y_ref = x * jnp.clip(x + 3.0, 0.0, 6.0) / 6.0
    assert y.shape == x.shape and y.dtype == x.dtype
    assert jnp.allclose(y, y_ref, atol=1e-6, rtol=1e-6)

    print("KERNEL_OK")
</pallas_src>

<mosaic_0001>
module attributes {stable_mosaic.version = 11 : i64} {
  func.func @_h_swish_kernel(%arg0: i32, %arg1: memref<8x256xf32, #tpu.memory_space<vmem>>, %arg2: memref<8x256xf32, #tpu.memory_space<vmem>>) attributes {dimension_semantics = [#tpu.dimension_semantics<parallel>], iteration_bounds = array<i64: 1>, scalar_prefetch = 0 : i64, scratch_operands = 0 : i64, tpu.core_type = #tpu.core_type<tc>, window_params = [{transform_indices = @transform_0, window_bounds = array<i64: 8, 256>}, {transform_indices = @transform_1, window_bounds = array<i64: 8, 256>}]} {
    %c0 = arith.constant 0 : index
    %c0_0 = arith.constant 0 : index
    %0 = vector.load %arg1[%c0, %c0_0] : memref<8x256xf32, #tpu.memory_space<vmem>>, vector<8x256xf32>
    %cst = arith.constant 3.000000e+00 : f32
    %1 = vector.broadcast %cst : f32 to vector<8x256xf32>
    %2 = arith.addf %0, %1 : vector<8x256xf32>
    %cst_1 = arith.constant 0.000000e+00 : f32
    %cst_2 = arith.constant 6.000000e+00 : f32
    %3 = vector.broadcast %cst_1 : f32 to vector<8x256xf32>
    %4 = arith.maximumf %3, %2 : vector<8x256xf32>
    %5 = vector.broadcast %cst_2 : f32 to vector<8x256xf32>
    %6 = arith.minimumf %5, %4 : vector<8x256xf32>
    %cst_3 = arith.constant 6.000000e+00 : f32
    %7 = vector.broadcast %cst_3 : f32 to vector<8x256xf32>
    %8 = arith.divf %6, %7 : vector<8x256xf32>
    %9 = arith.mulf %0, %8 : vector<8x256xf32>
    %c0_4 = arith.constant 0 : index
    %c0_5 = arith.constant 0 : index
    %10 = vector.load %arg2[%c0_4, %c0_5] : memref<8x256xf32, #tpu.memory_space<vmem>>, vector<8x256xf32>
    tpu.vector_store %arg2[%c0_4, %c0_5], %9 {strides = array<i32>} : memref<8x256xf32, #tpu.memory_space<vmem>>, vector<8x256xf32>,
    return
  }
  func.func @transform_0(%arg0: i32) -> (i32, i32) {
    %c0_i32 = arith.constant 0 : i32
    %c0_i32_0 = arith.constant 0 : i32
    return %arg0, %c0_i32 : i32, i32
  }
  func.func @transform_1(%arg0: i32) -> (i32, i32) {
    %c0_i32 = arith.constant 0 : i32
    %c0_i32_0 = arith.constant 0 : i32
    return %arg0, %c0_i32 : i32, i32
  }
}

</mosaic_0001>

<llo_original>
// kernel: h_swish.1
$region0: #{h_swish.1}
  #allocation0 [shape = 'u32[]', space=smem, size = 0x4, offset = 0x4, fixed_abs, tag = 'smem constant byte address 0x4 - core index']
  #allocation1 [shape = 'u32[144,128]{1,0:T(1,128)}', space=vmem, size = 0x12000, scoped, tag = 'internal scratch']
  %s0 = inlined_call_operand.vmem [shape: f32[8,256], index: 0, kind: input, shape index: {}]
  %s1 = inlined_call_operand.vmem [shape: f32[8,256], index: 1, kind: output, shape index: {}]
  %s2 = sld [smem:[#allocation0]]
  $region14: #{h_swish.1} parent=0
    _
  %s4 = ssub.s32 1, %s2
  %s5 = scalar_select 0, %s4, %s2
  // Predicated region
  $region2: #{h_swish.1} parent=0 // pred_check
    _
  $region3: #{h_swish.1} parent=0 // pred_check_branch
    %7 = sbr.rel (0) target = $region5
  $region4: #{h_swish.1} parent=0 // pred_region
    _
  $region5: #{h_swish.1} parent=0 // pred_fallthru
    _
  %v8 = vld [vmem:[%s0] sm:$0xff]
  %v9 = vld [vmem:[%s0 + $0x8] sm:$0xff]
  %v10 = vadd.f32 %v8, 3.0
  %v11 = vadd.f32 %v9, 3.0
  %v12 = vmax.f32 %v10, 0.0
  %v13 = vmax.f32 %v11, 0.0
  %v14 = vmin.f32 %v12, 6.0
  %v15 = vmin.f32 %v13, 6.0
  %v16 = vrcp.pop 6.0
  %v17 = vmul.f32 %v14, %v16
  %v18 = vmul.f32 %v15, %v16
  %v19 = vmul.f32 %v8, %v17
  %v20 = vmul.f32 %v9, %v18
  %21 = vst [vmem:[%s1] sm:$0xff] %v19
  %22 = vst [vmem:[%s1 + $0x8] sm:$0xff] %v20
  // Predicated region
  $region6: #{h_swish.1} parent=0 // pred_check
    _
  $region7: #{h_swish.1} parent=0 // pred_check_branch
    %24 = sbr.rel (0) target = $region9
  $region8: #{h_swish.1} parent=0 // pred_region
    _
  $region9: #{h_swish.1} parent=0 // pred_fallthru
    _
  // Predicated region
  $region10: #{h_swish.1} parent=0 // pred_check
    _
  $region11: #{h_swish.1} parent=0 // pred_check_branch
    %26 = sbr.rel (0) target = $region13
  $region12: #{h_swish.1} parent=0 // pred_region
    _
  $region13: #{h_swish.1} parent=0 // pred_fallthru
    _

</llo_original>
